<compile_context>
chip_gen: v6e
topology: v6e:2x2x1
jax: 0.10.0
libtpu: 0.0.40
codegen_flags: <defaults>
</compile_context>

<pallas_src>
import functools

import jax
import jax.numpy as jnp
import numpy as np
from jax.experimental import pallas as pl
from jax.experimental.pallas import tpu as pltpu


def _round_up(v, m):
    return (v + m - 1) // m * m


def _vmem_budget_bytes():
    # Per-generation VMEM budget: ~75% of the physical per-core VMEM
    # (v7x: 64 MiB -> 48 MiB budget; v5e/v6e: 128 MiB -> 96 MiB), leaving
    # headroom for Mosaic internal scratch.  Conservative fallback if the
    # query is unavailable.
    cap = 64 * 1024 * 1024
    try:
        cap = int(pltpu.get_tpu_info().vmem_capacity_bytes)
    except Exception:
        pass
    return max(cap * 3 // 4, 32 * 1024 * 1024)


_VMEM_BUDGET = _vmem_budget_bytes()


# --------------------------------------------------------------------------- #
# Pass 1: conv (one MXU matmul per tile) + per-channel sum / sumsq.
# --------------------------------------------------------------------------- #
def _conv_stats_kernel(w_ref, x_ref, y_ref, sum_ref, sq_ref):
    # w_ref:   (C_out_pad, KC_pad)  bf16  resident (constant block index)
    # x_ref:   (KC_pad,    TILE_N)  bf16
    # y_ref:   (C_out_pad, TILE_N)  bf16  conv intermediate (halved HBM traffic)
    # sum_ref: (C_out_pad, 1)       f32   accumulated across the inner grid axis
    # sq_ref:  (C_out_pad, 1)       f32
    @pl.when(pl.program_id(1) == 0)
    def _init():
        sum_ref[...] = jnp.zeros_like(sum_ref)
        sq_ref[...] = jnp.zeros_like(sq_ref)

    y = jnp.dot(w_ref[...], x_ref[...], preferred_element_type=jnp.float32)
    y_ref[...] = y.astype(y_ref.dtype)

    # NOTE: x_cols is zero-padded along N in the wrapper, so y in padded lanes
    # is exactly 0 and contributes nothing to sum/sumsq -- no lane mask needed.
    # If the wrapper ever pads with non-zero values, these statistics would
    # silently break.  Stats accumulate from the f32 matmul result, NOT the
    # bf16 store, so BN statistics do not pick up the downcast rounding.
    sum_ref[...] += jnp.sum(y, axis=1, keepdims=True)
    sq_ref[...] += jnp.sum(y * y, axis=1, keepdims=True)


# --------------------------------------------------------------------------- #
# Pass 2: BN folded into a per-channel FMA + ReLU.
# --------------------------------------------------------------------------- #
def _bn_relu_kernel(a_ref, b_ref, y_ref, o_ref):
    # a_ref/b_ref: (C_out_pad, 1) f32; y_ref: (C_out_pad, TILE_N) bf16;
    # o_ref: (C_out_pad, TILE_N) f32.
    y = y_ref[...].astype(jnp.float32)
    o_ref[...] = jnp.maximum(y * a_ref[...] + b_ref[...], 0.0)


@functools.partial(jax.jit, static_argnames=("stride", "padding", "dilation", "eps"))
def tdnn_layer(x, weight, gamma, beta, *, stride=1, padding=-1, dilation=1,
               eps=1e-5):
    """x: (B, C_in, T) f32; weight: (C_out, C_in, K) f32 (PyTorch Conv1d layout)."""
    b_sz, c_in, t = x.shape
    c_out, c_in_w, k_sz = weight.shape
    assert c_in == c_in_w
    if padding < 0:
        assert k_sz % 2 == 1, "Expect equal paddings for even kernel size"
        padding = (k_sz - 1) // 2 * dilation
    t_out = (t + 2 * padding - dilation * (k_sz - 1) - 1) // stride + 1
    n = b_sz * t_out                       # lane-dense N = batch * time

    kc = k_sz * c_in
    kc_pad = _round_up(kc, 16)             # bf16 sublane multiple
    c_out_pad = _round_up(c_out, 16)

    # ---- tile sizing from the per-generation VMEM budget (pass 1 dominates):
    #      2x double-buffered bf16 x block + 2x bf16 y block + 2x weights + slack.
    fixed = 2 * c_out_pad * kc_pad * 2 + 8 * c_out_pad * 4 + (2 << 20)
    per_lane = 4 * (kc_pad + c_out_pad)    # bytes of double-buffered blocks / lane
    tile_cap = max(128, (_VMEM_BUDGET - fixed) // per_lane)
    tile_n = min(2048, tile_cap, _round_up(n, 128))
    tile_n = max(128, tile_n // 128 * 128)

    num_tiles = -(-n // tile_n)
    # Outer "parallel" chunk axis so v7x's two TensorCores both run pass 1
    # (no-op on single-core v5e/v6e); per-chunk partial stats reduced below.
    num_chunks = 2 if num_tiles >= 2 else 1
    tiles_per_chunk = _round_up(num_tiles, num_chunks) // num_chunks
    num_tiles = num_chunks * tiles_per_chunk
    n_pad = num_tiles * tile_n

    # ---- plain-JAX glue: pad time, im2col (taps -> contraction dim), flatten
    #      batch into lanes, bf16 matmul operands, zero-pad to aligned shapes.
    # TODO(synk): fold the K taps in-kernel (lane-shifted dots over one wider x
    # tile) to avoid the K-fold duplication of x in HBM; kept wrapper-side for
    # simplicity and stride generality.
    xb = x.astype(jnp.bfloat16)
    x_time_pad = jnp.pad(xb, ((0, 0), (0, 0), (padding, padding)))
    cols = []
    for k in range(k_sz):                                   # static, small K
        start = k * dilation
        stop = start + (t_out - 1) * stride + 1
        xk = x_time_pad[:, :, start:stop:stride]            # (B, C_in, T_out)
        cols.append(jnp.transpose(xk, (1, 0, 2)).reshape(c_in, n))
    x_cols = jnp.concatenate(cols, axis=0)                  # (K*C_in, B*T_out)
    x_cols = jnp.pad(x_cols, ((0, kc_pad - kc), (0, n_pad - n)))   # ZERO pad

    w2 = jnp.transpose(weight, (0, 2, 1)).reshape(c_out, kc).astype(jnp.bfloat16)
    w2 = jnp.pad(w2, ((0, c_out_pad - c_out), (0, kc_pad - kc)))

    # ---- pass 1: conv + BN statistics ----
    cost1 = pl.CostEstimate(
        flops=2 * c_out_pad * kc_pad * n_pad + 4 * c_out_pad * n_pad,
        transcendentals=0,
        bytes_accessed=(c_out_pad * kc_pad * 2 + kc_pad * n_pad * 2
                        + c_out_pad * n_pad * 2 + 2 * num_chunks * c_out_pad * 4))
    y_conv, sum_c, sq_c = pl.pallas_call(
        _conv_stats_kernel,
        grid=(num_chunks, tiles_per_chunk),
        in_specs=[
            pl.BlockSpec((c_out_pad, kc_pad), lambda c, j: (0, 0)),   # resident
            pl.BlockSpec((kc_pad, tile_n),
                         lambda c, j: (0, c * tiles_per_chunk + j)),
        ],
        out_specs=(
            pl.BlockSpec((c_out_pad, tile_n),
                         lambda c, j: (0, c * tiles_per_chunk + j)),
            pl.BlockSpec((None, c_out_pad, 1), lambda c, j: (c, 0, 0)),
            pl.BlockSpec((None, c_out_pad, 1), lambda c, j: (c, 0, 0)),
        ),
        out_shape=(
            jax.ShapeDtypeStruct((c_out_pad, n_pad), jnp.bfloat16),
            jax.ShapeDtypeStruct((num_chunks, c_out_pad, 1), jnp.float32),
            jax.ShapeDtypeStruct((num_chunks, c_out_pad, 1), jnp.float32),
        ),
        compiler_params=pltpu.CompilerParams(
            dimension_semantics=("parallel", "arbitrary"),
            vmem_limit_bytes=_VMEM_BUDGET),
        cost_estimate=cost1,
    )(w2, x_cols)

    # ---- tiny per-channel math (C_out-length vectors) in plain JAX:
    #      reduce per-chunk partial stats; fold BN into one FMA per element:
    #      a = gamma/sqrt(var+eps), b = beta - mean*a  (biased variance). ----
    y_sum = jnp.sum(sum_c[:, :, 0], axis=0)                 # (c_out_pad,)
    y_sq = jnp.sum(sq_c[:, :, 0], axis=0)
    mean = y_sum / n
    var = jnp.maximum(y_sq / n - mean * mean, 0.0)
    inv_std = jax.lax.rsqrt(var + eps)
    gamma_p = jnp.pad(gamma.astype(jnp.float32), (0, c_out_pad - c_out))
    beta_p = jnp.pad(beta.astype(jnp.float32), (0, c_out_pad - c_out))
    a = (gamma_p * inv_std).reshape(c_out_pad, 1)
    b = (beta_p - mean * gamma_p * inv_std).reshape(c_out_pad, 1)

    # ---- pass 2: y*a + b, ReLU (bf16 read, f32 write) ----
    cost2 = pl.CostEstimate(
        flops=3 * c_out_pad * n_pad,
        transcendentals=0,
        bytes_accessed=(c_out_pad * n_pad * 2 + c_out_pad * n_pad * 4
                        + 2 * c_out_pad * 4))
    out_flat = pl.pallas_call(
        _bn_relu_kernel,
        grid=(num_tiles,),
        in_specs=[
            pl.BlockSpec((c_out_pad, 1), lambda j: (0, 0)),
            pl.BlockSpec((c_out_pad, 1), lambda j: (0, 0)),
            pl.BlockSpec((c_out_pad, tile_n), lambda j: (0, j)),
        ],
        out_specs=pl.BlockSpec((c_out_pad, tile_n), lambda j: (0, j)),
        out_shape=jax.ShapeDtypeStruct((c_out_pad, n_pad), jnp.float32),
        compiler_params=pltpu.CompilerParams(
            dimension_semantics=("parallel",),
            vmem_limit_bytes=_VMEM_BUDGET),
        cost_estimate=cost2,
    )(a, b, y_conv)

    out = out_flat[:c_out, :n].reshape(c_out, b_sz, t_out)
    return jnp.transpose(out, (1, 0, 2))                    # (B, C_out, T_out)


def _reference(x, weight, gamma, beta, *, stride, padding, dilation, eps=1e-5):
    """Plain-JAX reference (mirrors the kernel's bf16 operands / intermediate)."""
    k_sz = weight.shape[-1]
    if padding < 0:
        padding = (k_sz - 1) // 2 * dilation
    xb = x.astype(jnp.bfloat16).astype(jnp.float32)
    wb = weight.astype(jnp.bfloat16).astype(jnp.float32)
    y = jax.lax.conv_general_dilated(
        xb, wb, window_strides=(stride,), padding=[(padding, padding)],
        rhs_dilation=(dilation,), dimension_numbers=('NCH', 'OIH', 'NCH'),
        precision=jax.lax.Precision.HIGHEST)
    mean = y.mean(axis=(0, 2), keepdims=True)               # stats from f32 y
    var = ((y - mean) ** 2).mean(axis=(0, 2), keepdims=True)
    y_bf = y.astype(jnp.bfloat16).astype(jnp.float32)       # bf16 intermediate
    y = (y_bf - mean) / jnp.sqrt(var + eps) * gamma[None, :, None] + beta[None, :, None]
    return jnp.maximum(y, 0.0)


if __name__ == "__main__":
    # Small shapes consistent with the module: B=2, C_in=4, C_out=8, T=16, K=3.
    B, C_IN, C_OUT, T, K = 2, 4, 8, 16, 3
    STRIDE, PADDING, DILATION = 1, -1, 1   # padding=-1 -> "same" padding, as in module

    key = jax.random.PRNGKey(0)
    kx, kw = jax.random.split(key)
    x = jax.random.normal(kx, (B, C_IN, T), dtype=jnp.float32)

    # Conv1d weight (bias=False), PyTorch-style uniform(-1/sqrt(fan_in), 1/sqrt(fan_in)).
    bound = 1.0 / np.sqrt(C_IN * K)
    weight = jax.random.uniform(kw, (C_OUT, C_IN, K), dtype=jnp.float32,
                                minval=-bound, maxval=bound)
    # BatchNorm1d affine params (deterministic, slightly perturbed from PyTorch init).
    gamma = 1.0 + 0.05 * jnp.arange(C_OUT, dtype=jnp.float32)
    beta = 0.02 * jnp.arange(C_OUT, dtype=jnp.float32)

    out = tdnn_layer(x, weight, gamma, beta, stride=STRIDE, padding=PADDING,
                     dilation=DILATION)
    out = jax.block_until_ready(out)

    ref = _reference(x, weight, gamma, beta, stride=STRIDE, padding=PADDING,
                     dilation=DILATION)
    np.testing.assert_allclose(np.asarray(out), np.asarray(ref),
                               rtol=1e-3, atol=1e-3)
    print("KERNEL_OK")
</pallas_src>

<mosaic_0001>
module attributes {stable_mosaic.version = 11 : i64} {
  func.func @_conv_stats_kernel(%arg0: i32, %arg1: i32, %arg2: memref<16x16xbf16, #tpu.memory_space<vmem>>, %arg3: memref<16x128xbf16, #tpu.memory_space<vmem>>, %arg4: memref<16x128xbf16, #tpu.memory_space<vmem>>, %arg5: memref<1x16x1xf32, #tpu.memory_space<vmem>>, %arg6: memref<1x16x1xf32, #tpu.memory_space<vmem>>) attributes {dimension_semantics = [#tpu.dimension_semantics<parallel>, #tpu.dimension_semantics<arbitrary>], iteration_bounds = array<i64: 1, 1>, scalar_prefetch = 0 : i64, scratch_operands = 0 : i64, tpu.core_type = #tpu.core_type<tc>, window_params = [{pipeline_mode = #tpu.pipeline_mode<synchronous>, transform_indices = @transform_0, window_bounds = array<i64: 16, 16>}, {transform_indices = @transform_1, window_bounds = array<i64: 16, 128>}, {transform_indices = @transform_2, window_bounds = array<i64: 16, 128>}, {transform_indices = @transform_3, window_bounds = array<i64: 1, 16, 1>}, {transform_indices = @transform_4, window_bounds = array<i64: 1, 16, 1>}]} {
    %c0_i32 = arith.constant 0 : i32
    %0 = arith.cmpi eq, %arg1, %c0_i32 : i32
    %1 = arith.extui %0 : i1 to i32
    %c0_i32_0 = arith.constant 0 : i32
    %2 = arith.cmpi ne, %1, %c0_i32_0 : i32
    scf.if %2 {
      %cst_20 = arith.constant 0.000000e+00 : f32
      %25 = vector.broadcast %cst_20 : f32 to vector<16x1xf32>
      %c0_21 = arith.constant 0 : index
      %c0_22 = arith.constant 0 : index
      %c0_23 = arith.constant 0 : index
      %26 = vector.load %arg5[%c0_21, %c0_22, %c0_23] : memref<1x16x1xf32, #tpu.memory_space<vmem>>, vector<1x16x1xf32>
      %27 = vector.shape_cast %26 : vector<1x16x1xf32> to vector<16x1xf32>
      %28 = vector.shape_cast %25 : vector<16x1xf32> to vector<1x16x1xf32>
      tpu.vector_store %arg5[%c0_21, %c0_22, %c0_23], %28 {strides = array<i32>} : memref<1x16x1xf32, #tpu.memory_space<vmem>>, vector<1x16x1xf32>,
      %cst_24 = arith.constant 0.000000e+00 : f32
      %29 = vector.broadcast %cst_24 : f32 to vector<16x1xf32>
      %c0_25 = arith.constant 0 : index
      %c0_26 = arith.constant 0 : index
      %c0_27 = arith.constant 0 : index
      %30 = vector.load %arg6[%c0_25, %c0_26, %c0_27] : memref<1x16x1xf32, #tpu.memory_space<vmem>>, vector<1x16x1xf32>
      %31 = vector.shape_cast %30 : vector<1x16x1xf32> to vector<16x1xf32>
      %32 = vector.shape_cast %29 : vector<16x1xf32> to vector<1x16x1xf32>
      tpu.vector_store %arg6[%c0_25, %c0_26, %c0_27], %32 {strides = array<i32>} : memref<1x16x1xf32, #tpu.memory_space<vmem>>, vector<1x16x1xf32>,
    } else {
    }
    %c0 = arith.constant 0 : index
    %c0_1 = arith.constant 0 : index
    %3 = vector.load %arg2[%c0, %c0_1] : memref<16x16xbf16, #tpu.memory_space<vmem>>, vector<16x16xbf16>
    %c0_2 = arith.constant 0 : index
    %c0_3 = arith.constant 0 : index
    %4 = vector.load %arg3[%c0_2, %c0_3] : memref<16x128xbf16, #tpu.memory_space<vmem>>, vector<16x128xbf16>
    %cst = arith.constant dense<0.000000e+00> : vector<16x128xf32>
    %5 = tpu.matmul %3, %4, %cst {dimension_numbers = #tpu.dot_dimension_numbers<[1], [0], [0], [1], [0, 0, 1, 1], [], []>} : vector<16x16xbf16>, vector<16x128xbf16>, vector<16x128xf32> -> vector<16x128xf32>
    %6 = arith.truncf %5 : vector<16x128xf32> to vector<16x128xbf16>
    %c0_4 = arith.constant 0 : index
    %c0_5 = arith.constant 0 : index
    %7 = vector.load %arg4[%c0_4, %c0_5] : memref<16x128xbf16, #tpu.memory_space<vmem>>, vector<16x128xbf16>
    tpu.vector_store %arg4[%c0_4, %c0_5], %6 {strides = array<i32>} : memref<16x128xbf16, #tpu.memory_space<vmem>>, vector<16x128xbf16>,
    %c0_6 = arith.constant 0 : index
    %c0_7 = arith.constant 0 : index
    %c0_8 = arith.constant 0 : index
    %8 = vector.load %arg5[%c0_6, %c0_7, %c0_8] : memref<1x16x1xf32, #tpu.memory_space<vmem>>, vector<1x16x1xf32>
    %9 = vector.shape_cast %8 : vector<1x16x1xf32> to vector<16x1xf32>
    %cst_9 = arith.constant dense<0.000000e+00> : vector<16xf32>
    %10 = vector.multi_reduction <add>, %5, %cst_9 [1] : vector<16x128xf32> to vector<16xf32>
    %11 = vector.shape_cast %10 : vector<16xf32> to vector<16x1xf32>
    %12 = arith.addf %9, %11 : vector<16x1xf32>
    %c0_10 = arith.constant 0 : index
    %c0_11 = arith.constant 0 : index
    %c0_12 = arith.constant 0 : index
    %13 = vector.load %arg5[%c0_10, %c0_11, %c0_12] : memref<1x16x1xf32, #tpu.memory_space<vmem>>, vector<1x16x1xf32>
    %14 = vector.shape_cast %13 : vector<1x16x1xf32> to vector<16x1xf32>
    %15 = vector.shape_cast %12 : vector<16x1xf32> to vector<1x16x1xf32>
    tpu.vector_store %arg5[%c0_10, %c0_11, %c0_12], %15 {strides = array<i32>} : memref<1x16x1xf32, #tpu.memory_space<vmem>>, vector<1x16x1xf32>,
    %c0_13 = arith.constant 0 : index
    %c0_14 = arith.constant 0 : index
    %c0_15 = arith.constant 0 : index
    %16 = vector.load %arg6[%c0_13, %c0_14, %c0_15] : memref<1x16x1xf32, #tpu.memory_space<vmem>>, vector<1x16x1xf32>
    %17 = vector.shape_cast %16 : vector<1x16x1xf32> to vector<16x1xf32>
    %18 = arith.mulf %5, %5 : vector<16x128xf32>
    %cst_16 = arith.constant dense<0.000000e+00> : vector<16xf32>
    %19 = vector.multi_reduction <add>, %18, %cst_16 [1] : vector<16x128xf32> to vector<16xf32>
    %20 = vector.shape_cast %19 : vector<16xf32> to vector<16x1xf32>
    %21 = arith.addf %17, %20 : vector<16x1xf32>
    %c0_17 = arith.constant 0 : index
    %c0_18 = arith.constant 0 : index
    %c0_19 = arith.constant 0 : index
    %22 = vector.load %arg6[%c0_17, %c0_18, %c0_19] : memref<1x16x1xf32, #tpu.memory_space<vmem>>, vector<1x16x1xf32>
    %23 = vector.shape_cast %22 : vector<1x16x1xf32> to vector<16x1xf32>
    %24 = vector.shape_cast %21 : vector<16x1xf32> to vector<1x16x1xf32>
    tpu.vector_store %arg6[%c0_17, %c0_18, %c0_19], %24 {strides = array<i32>} : memref<1x16x1xf32, #tpu.memory_space<vmem>>, vector<1x16x1xf32>,
    return
  }
  func.func @transform_0(%arg0: i32, %arg1: i32) -> (i32, i32) {
    %c0_i32 = arith.constant 0 : i32
    %c0_i32_0 = arith.constant 0 : i32
    %c0_i32_1 = arith.constant 0 : i32
    return %c0_i32, %c0_i32_0 : i32, i32
  }
  func.func @transform_1(%arg0: i32, %arg1: i32) -> (i32, i32) {
    %c1_i32 = arith.constant 1 : i32
    %0 = arith.muli %arg0, %c1_i32 : i32
    %1 = arith.addi %0, %arg1 : i32
    %c0_i32 = arith.constant 0 : i32
    %c0_i32_0 = arith.constant 0 : i32
    return %c0_i32, %1 : i32, i32
  }
  func.func @transform_2(%arg0: i32, %arg1: i32) -> (i32, i32) {
    %c1_i32 = arith.constant 1 : i32
    %0 = arith.muli %arg0, %c1_i32 : i32
    %1 = arith.addi %0, %arg1 : i32
    %c0_i32 = arith.constant 0 : i32
    %c0_i32_0 = arith.constant 0 : i32
    return %c0_i32, %1 : i32, i32
  }
  func.func @transform_3(%arg0: i32, %arg1: i32) -> (i32, i32, i32) {
    %c0_i32 = arith.constant 0 : i32
    %c0_i32_0 = arith.constant 0 : i32
    %c0_i32_1 = arith.constant 0 : i32
    return %arg0, %c0_i32, %c0_i32_0 : i32, i32, i32
  }
  func.func @transform_4(%arg0: i32, %arg1: i32) -> (i32, i32, i32) {
    %c0_i32 = arith.constant 0 : i32
    %c0_i32_0 = arith.constant 0 : i32
    %c0_i32_1 = arith.constant 0 : i32
    return %arg0, %c0_i32, %c0_i32_0 : i32, i32, i32
  }
}

module attributes {stable_mosaic.version = 11 : i64} {
  func.func @_bn_relu_kernel(%arg0: i32, %arg1: memref<16x1xf32, #tpu.memory_space<vmem>>, %arg2: memref<16x1xf32, #tpu.memory_space<vmem>>, %arg3: memref<16x128xbf16, #tpu.memory_space<vmem>>, %arg4: memref<16x128xf32, #tpu.memory_space<vmem>>) attributes {dimension_semantics = [#tpu.dimension_semantics<parallel>], iteration_bounds = array<i64: 1>, scalar_prefetch = 0 : i64, scratch_operands = 0 : i64, tpu.core_type = #tpu.core_type<tc>, window_params = [{pipeline_mode = #tpu.pipeline_mode<synchronous>, transform_indices = @transform_0, window_bounds = array<i64: 16, 1>}, {pipeline_mode = #tpu.pipeline_mode<synchronous>, transform_indices = @transform_1, window_bounds = array<i64: 16, 1>}, {transform_indices = @transform_2, window_bounds = array<i64: 16, 128>}, {transform_indices = @transform_3, window_bounds = array<i64: 16, 128>}]} {
    %c0 = arith.constant 0 : index
    %c0_0 = arith.constant 0 : index
    %0 = vector.load %arg3[%c0, %c0_0] : memref<16x128xbf16, #tpu.memory_space<vmem>>, vector<16x128xbf16>
    %1 = arith.extf %0 : vector<16x128xbf16> to vector<16x128xf32>
    %c0_1 = arith.constant 0 : index
    %c0_2 = arith.constant 0 : index
    %2 = vector.load %arg1[%c0_1, %c0_2] : memref<16x1xf32, #tpu.memory_space<vmem>>, vector<16x1xf32>
    %3 = vector.broadcast %2 : vector<16x1xf32> to vector<16x128xf32>
    %4 = arith.mulf %1, %3 : vector<16x128xf32>
    %c0_3 = arith.constant 0 : index
    %c0_4 = arith.constant 0 : index
    %5 = vector.load %arg2[%c0_3, %c0_4] : memref<16x1xf32, #tpu.memory_space<vmem>>, vector<16x1xf32>
    %6 = vector.broadcast %5 : vector<16x1xf32> to vector<16x128xf32>
    %7 = arith.addf %4, %6 : vector<16x128xf32>
    %cst = arith.constant 0.000000e+00 : f32
    %8 = vector.broadcast %cst : f32 to vector<16x128xf32>
    %9 = arith.maximumf %7, %8 : vector<16x128xf32>
    %c0_5 = arith.constant 0 : index
    %c0_6 = arith.constant 0 : index
    %10 = vector.load %arg4[%c0_5, %c0_6] : memref<16x128xf32, #tpu.memory_space<vmem>>, vector<16x128xf32>
    tpu.vector_store %arg4[%c0_5, %c0_6], %9 {strides = array<i32>} : memref<16x128xf32, #tpu.memory_space<vmem>>, vector<16x128xf32>,
    return
  }
  func.func @transform_0(%arg0: i32) -> (i32, i32) {
    %c0_i32 = arith.constant 0 : i32
    %c0_i32_0 = arith.constant 0 : i32
    %c0_i32_1 = arith.constant 0 : i32
    return %c0_i32, %c0_i32_0 : i32, i32
  }
  func.func @transform_1(%arg0: i32) -> (i32, i32) {
    %c0_i32 = arith.constant 0 : i32
    %c0_i32_0 = arith.constant 0 : i32
    %c0_i32_1 = arith.constant 0 : i32
    return %c0_i32, %c0_i32_0 : i32, i32
  }
  func.func @transform_2(%arg0: i32) -> (i32, i32) {
    %c0_i32 = arith.constant 0 : i32
    %c0_i32_0 = arith.constant 0 : i32
    return %c0_i32, %arg0 : i32, i32
  }
  func.func @transform_3(%arg0: i32) -> (i32, i32) {
    %c0_i32 = arith.constant 0 : i32
    %c0_i32_0 = arith.constant 0 : i32
    return %c0_i32, %arg0 : i32, i32
  }
}

</mosaic_0001>

<llo_original>
// kernel: tdnn_layer.3
$region0: #{tdnn_layer.3}
  #allocation0 [shape = 'u32[]', space=smem, size = 0x4, offset = 0x4, fixed_abs, tag = 'smem constant byte address 0x4 - core index']
  #allocation1 [shape = 'u32[144,128]{1,0:T(1,128)}', space=vmem, size = 0x12000, scoped, tag = 'internal scratch']
  %s0 = inlined_call_operand.vmem [shape: f32[16,1], index: 0, kind: input, shape index: {}]
  %s1 = inlined_call_operand.vmem [shape: f32[16,1], index: 1, kind: input, shape index: {}]
  %s2 = inlined_call_operand.vmem [shape: bf16[16,128], index: 2, kind: input, shape index: {}]
  %s3 = inlined_call_operand.vmem [shape: f32[16,128], index: 3, kind: output, shape index: {}]
  %s4 = sld [smem:[#allocation0]]
  $region22: #{tdnn_layer.3} parent=0
    _
  %s6 = ssub.s32 1, %s4
  %s7 = scalar_select 0, %s6, %s4
  // Predicated region
  $region2: #{tdnn_layer.3} parent=0 // pred_check
    _
  $region3: #{tdnn_layer.3} parent=0 // pred_check_branch
    %9 = sbr.rel (0) target = $region5
  $region4: #{tdnn_layer.3} parent=0 // pred_region
    _
  $region5: #{tdnn_layer.3} parent=0 // pred_fallthru
    _
  // Predicated region
  $region6: #{tdnn_layer.3} parent=0 // pred_check
    _
  $region7: #{tdnn_layer.3} parent=0 // pred_check_branch
    %11 = sbr.rel (0) target = $region9
  $region8: #{tdnn_layer.3} parent=0 // pred_region
    _
  $region9: #{tdnn_layer.3} parent=0 // pred_fallthru
    _
  // Predicated region
  $region10: #{tdnn_layer.3} parent=0 // pred_check
    _
  $region11: #{tdnn_layer.3} parent=0 // pred_check_branch
    %13 = sbr.rel (0) target = $region13
  $region12: #{tdnn_layer.3} parent=0 // pred_region
    _
  $region13: #{tdnn_layer.3} parent=0 // pred_fallthru
    _
  %v14 = vld [vmem:[%s2] sm:$0xf]
  %v15 = vld [vmem:[%s2 + $0x4] sm:$0xf]
  %v16 = vunpack.c.l.bf16 %v14
  %v17 = vunpack.c.l.bf16 %v15
  %v18 = vld [vmem:[%s0] sm:$0xff]
  %v19 = vld [vmem:[%s0 + $0x8] sm:$0xff]
  %21 = vset.pattern.permute.xlu0 0
  %22 = vperm.xlu0 %21, %v18
  %v23 = vpop.permute.xlu0 %22
  %26 = vset.pattern.permute.xlu0 0
  %27 = vperm.xlu0 %26, %v19
  %v28 = vpop.permute.xlu0 %27
  %v30 = vmul.f32 %v16, %v23
  %v31 = vmul.f32 %v17, %v28
  %v32 = vld [vmem:[%s1] sm:$0xff]
  %v33 = vld [vmem:[%s1 + $0x8] sm:$0xff]
  %35 = vset.pattern.permute.xlu0 0
  %36 = vperm.xlu0 %35, %v32
  %v37 = vpop.permute.xlu0 %36
  %40 = vset.pattern.permute.xlu0 0
  %41 = vperm.xlu0 %40, %v33
  %v42 = vpop.permute.xlu0 %41
  %v44 = vadd.f32 %v30, %v37
  %v45 = vadd.f32 %v31, %v42
  %v46 = vmax.f32 %v44, 0.0
  %v47 = vmax.f32 %v45, 0.0
  %48 = vst [vmem:[%s3] sm:$0xff] %v46
  %49 = vst [vmem:[%s3 + $0x8] sm:$0xff] %v47
  // Predicated region
  $region14: #{tdnn_layer.3} parent=0 // pred_check
    _
  $region15: #{tdnn_layer.3} parent=0 // pred_check_branch
    %51 = sbr.rel (0) target = $region17
  $region16: #{tdnn_layer.3} parent=0 // pred_region
    _
  $region17: #{tdnn_layer.3} parent=0 // pred_fallthru
    _
  // Predicated region
  $region18: #{tdnn_layer.3} parent=0 // pred_check
    _
  $region19: #{tdnn_layer.3} parent=0 // pred_check_branch
    %53 = sbr.rel (0) target = $region21
  $region20: #{tdnn_layer.3} parent=0 // pred_region
    _
  $region21: #{tdnn_layer.3} parent=0 // pred_fallthru
    _

// kernel: tdnn_layer.2
$region0: #{tdnn_layer.2}
  #allocation0 [shape = 'u32[]', space=smem, size = 0x4, offset = 0x4, fixed_abs, tag = 'smem constant byte address 0x4 - core index']
  #allocation1 [shape = 'u32[144,128]{1,0:T(1,128)}', space=vmem, size = 0x12000, scoped, tag = 'internal scratch']
  %s0 = inlined_call_operand.vmem [shape: bf16[16,16], index: 0, kind: input, shape index: {}]
  %s1 = inlined_call_operand.vmem [shape: bf16[16,128], index: 1, kind: input, shape index: {}]
  %s2 = inlined_call_operand.vmem [shape: bf16[16,128], index: 2, kind: output, shape index: {0}]
  %s3 = inlined_call_operand.vmem [shape: f32[1,16,1], index: 3, kind: output, shape index: {1}]
  %s4 = inlined_call_operand.vmem [shape: f32[1,16,1], index: 4, kind: output, shape index: {2}]
  %5 = xla_tuple %s2, %s3, %s4
  %s6 = sld [smem:[#allocation0]]
  $region38: #{tdnn_layer.2} parent=0
    _
  %s8 = ssub.s32 1, %s6
  %s9 = scalar_select 0, %s8, %s6
  // Predicated region
  $region2: #{tdnn_layer.2} parent=0 // pred_check
    _
  $region3: #{tdnn_layer.2} parent=0 // pred_check_branch
    %11 = sbr.rel (0) target = $region5
  $region4: #{tdnn_layer.2} parent=0 // pred_region
    _
  $region5: #{tdnn_layer.2} parent=0 // pred_fallthru
    _
  // Predicated region
  $region6: #{tdnn_layer.2} parent=0 // pred_check
    _
  $region7: #{tdnn_layer.2} parent=0 // pred_check_branch
    %13 = sbr.rel (0) target = $region9
  $region8: #{tdnn_layer.2} parent=0 // pred_region
    %s14 = sadd.s32 0, 0
    %p15 = scmp.lt.s32.totalorder %s14, 0
    %s16 = scalar_select %p15, %s14, 0
    %s17 = smul.addr %s16, 4
    %s18 = scalar_lea.vmem %s1, %s17
    %s19 = sadd.s32 0, 0
  $region9: #{tdnn_layer.2} parent=0 // pred_fallthru
    _
  %s20 = sadd.s32 0, 0
  %p21 = scmp.lt.s32.totalorder %s20, 0
  %s22 = scalar_select %p21, %s20, 0
  %s23 = smul.addr %s22, 4
  %s24 = scalar_lea.vmem %s1, %s23
  %s25 = sadd.s32 0, 0
  %p26 = scmp.lt.s32.totalorder %s25, 0
  %s27 = scalar_select %p26, %s25, 0
  %s28 = smul.addr %s27, 4
  %s29 = scalar_lea.vmem %s2, %s28
  %s30 = sadd.s32 0, 0
  %p31 = scmp.lt.s32.totalorder %s30, 0
  %s32 = scalar_select %p31, %s30, 0
  %s33 = smul.addr %s32, 4
  %s34 = scalar_lea.vmem %s1, %s33
  %s35 = sadd.s32 0, 0
  %s36 = sadd.s32 0, 0
  %p37 = scmp.lt.s32.totalorder %s36, 0
  %s38 = scalar_select %p37, %s36, 0
  %s39 = smul.addr %s38, 4
  %s40 = scalar_lea.vmem %s2, %s39
  %s41 = sadd.s32 0, 0
  %p43 = scmp.eq.s32.totalorder 0, 0
  // Predicated region
  $region10: #{tdnn_layer.2} parent=0 // pred_check
    %p44 = pneg %p43
  $region11: #{tdnn_layer.2} parent=0 // pred_check_branch
    %46 = sbr.rel (%p44) target = $region13
  $region12: #{tdnn_layer.2} parent=0 // pred_region
    %vm47 = vcmask 7168
    %48 = vst.msk [vmem:[%s3] sm:$0xff] %vm47, 0.0
    %49 = vst.msk [vmem:[%s3 + $0x8] sm:$0xff] %vm47, 0.0
    %50 = vst.msk [vmem:[%s4] sm:$0xff] %vm47, 0.0
    %51 = vst.msk [vmem:[%s4 + $0x8] sm:$0xff] %vm47, 0.0
  $region13: #{tdnn_layer.2} parent=0 // pred_fallthru
    _
  %v52 = vld [vmem:[%s0] sm:$0xf]
  %v53 = vld [vmem:[%s0 + $0x4] sm:$0xf]
  %v54 = vld [vmem:[%s34] sm:$0xf]
  %v55 = vld [vmem:[%s34 + $0x4] sm:$0xf]
  %v58 = vunpack.c.l.b16 %v52
  %v59 = vunpack.c.l.b16 %v53
  %v60 = vpack.c.b16 %v59, %v58
  %v63 = vunpack.c.l.b16 %v54
  %v64 = vunpack.c.l.b16 %v55
  %v65 = vpack.c.b16 %v64, %v63
  %vm67 = vcmask 130048
  %v69 = vsel %vm67, %v60, 0
  %71 = vmatprep.subr.bf16.mxu0 0
  %72 = vmatpush1.bf16.msra.mxu0 0
  %73 = vmatprep.subr.bf16.mxu0 0
  %74 = vmatpush1.bf16.msra.mxu0 0
  %75 = vmatprep.subr.bf16.mxu0 0
  %76 = vmatpush1.bf16.msra.mxu0 0
  %77 = vmatprep.subr.bf16.mxu0 0
  %78 = vmatpush1.bf16.msra.mxu0 0
  %79 = vmatprep.subr.bf16.mxu0 0
  %80 = vmatpush1.bf16.msra.mxu0 0
  %81 = vmatprep.subr.bf16.mxu0 0
  %82 = vmatpush1.bf16.msra.mxu0 0
  %83 = vmatprep.subr.bf16.mxu0 0
  %84 = vmatpush1.bf16.msra.mxu0 0
  %85 = vmatprep.subr.bf16.mxu0 0
  %86 = vmatpush1.bf16.msra.mxu0 %v65
  %87 = vmatprep.subr.bf16.mxu0 0
  %88 = vmatpush2.bf16.msra.mxu0 0
  %89 = vmatprep.subr.bf16.mxu0 0
  %90 = vmatpush2.bf16.msra.mxu0 0
  %91 = vmatprep.subr.bf16.mxu0 0
  %92 = vmatpush2.bf16.msra.mxu0 0
  %93 = vmatprep.subr.bf16.mxu0 0
  %94 = vmatpush2.bf16.msra.mxu0 0
  %95 = vmatprep.subr.bf16.mxu0 0
  %96 = vmatpush2.bf16.msra.mxu0 0
  %97 = vmatprep.subr.bf16.mxu0 0
  %98 = vmatpush2.bf16.msra.mxu0 0
  %99 = vmatprep.subr.bf16.mxu0 0
  %100 = vmatpush2.bf16.msra.mxu0 0
  %101 = vmatprep.subr.bf16.mxu0 0
  %102 = vmatpush2.bf16.msra.mxu0 0
  %103 = vmatprep.mubr.bf16.mxu0 0
  %104 = vmatmul.mubr.bf16.gmra.mxu0 %v69
  %v105 = vpop.f32.mrf.mxu0
  %v106 = vadd.f32 0.0, %v105
  %v107 = vpop.f32.mrf.mxu0
  %v108 = vpop.f32.mrf.mxu0
  %v109 = vadd.f32 0.0, %v108
  %v110 = vpop.f32.mrf.mxu0
  %111 = vdwg.mxu0
  %v112 = vpack.c.bf16 %v109, %v106
  %v114 = vunpack.c.l.b16 %v112
  %v115 = vunpack.c.h.b16 %v112
  %v116 = vpack.c.b16 %v114, %v114
  %v117 = vpack.c.b16 %v115, %v115
  %120 = vst [vmem:[%s40] sm:$0xf] %v116
  %121 = vst [vmem:[%s40 + $0x4] sm:$0xf] %v117
  %v122 = vld [vmem:[%s3] sm:$0xff]
  %v123 = vld [vmem:[%s3 + $0x8] sm:$0xff]
  %124 = vadd.xlane.f32.xlu0 %v106
  %v125 = vpop.xlane.xlu0 %124
  %126 = vadd.xlane.f32.xlu0 %v109
  %v127 = vpop.xlane.xlu0 %126
  %v128 = vadd.f32 %v122, %v125
  %v129 = vadd.f32 %v123, %v127
  %vm130 = vcmask 7168
  %131 = vst.msk [vmem:[%s3] sm:$0xff] %vm130, %v128
  %132 = vst.msk [vmem:[%s3 + $0x8] sm:$0xff] %vm130, %v129
  %v133 = vld [vmem:[%s4] sm:$0xff]
  %v134 = vld [vmem:[%s4 + $0x8] sm:$0xff]
  %v135 = vmul.f32 %v106, %v106
  %v136 = vmul.f32 %v109, %v109
  %137 = vadd.xlane.f32.xlu0 %v135
  %v138 = vpop.xlane.xlu0 %137
  %139 = vadd.xlane.f32.xlu0 %v136
  %v140 = vpop.xlane.xlu0 %139
  %v141 = vadd.f32 %v133, %v138
  %v142 = vadd.f32 %v134, %v140
  %143 = vst.msk [vmem:[%s4] sm:$0xff] %vm130, %v141
  %144 = vst.msk [vmem:[%s4 + $0x8] sm:$0xff] %vm130, %v142
  %s145 = sadd.s32 0, 0
  %p146 = scmp.lt.s32.totalorder %s145, 0
  %s147 = scalar_select %p146, %s145, 0
  %s148 = smul.addr %s147, 4
  %s149 = scalar_lea.vmem %s2, %s148
  // Predicated region
  $region14: #{tdnn_layer.2} parent=0 // pred_check
    _
  $region15: #{tdnn_layer.2} parent=0 // pred_check_branch
    %151 = sbr.rel (0) target = $region17
  $region16: #{tdnn_layer.2} parent=0 // pred_region
    %s152 = sadd.s32 0, 0
  $region17: #{tdnn_layer.2} parent=0 // pred_fallthru
    _
  // Predicated region
  $region18: #{tdnn_layer.2} parent=0 // pred_check
    _
  $region19: #{tdnn_layer.2} parent=0 // pred_check_branch
    %154 = sbr.rel (0) target = $region21
  $region20: #{tdnn_layer.2} parent=0 // pred_region
    _
  $region21: #{tdnn_layer.2} parent=0 // pred_fallthru
    _
  // Predicated region
  $region22: #{tdnn_layer.2} parent=0 // pred_check
    _
  $region23: #{tdnn_layer.2} parent=0 // pred_check_branch
    %156 = sbr.rel (0) target = $region25
  $region24: #{tdnn_layer.2} parent=0 // pred_region
    _
  $region25: #{tdnn_layer.2} parent=0 // pred_fallthru
    _
  // Predicated region
  $region26: #{tdnn_layer.2} parent=0 // pred_check
    _
  $region27: #{tdnn_layer.2} parent=0 // pred_check_branch
    %158 = sbr.rel (0) target = $region29
  $region28: #{tdnn_layer.2} parent=0 // pred_region
    %s159 = sadd.s32 0, 0
    %p160 = scmp.lt.s32.totalorder %s159, 0
    %s161 = scalar_select %p160, %s159, 0
    %s162 = smul.addr %s161, 4
    %s163 = scalar_lea.vmem %s2, %s162
  $region29: #{tdnn_layer.2} parent=0 // pred_fallthru
    _
  // Predicated region
  $region30: #{tdnn_layer.2} parent=0 // pred_check
    _
  $region31: #{tdnn_layer.2} parent=0 // pred_check_branch
    %165 = sbr.rel (0) target = $region33
  $region32: #{tdnn_layer.2} parent=0 // pred_region
    _
  $region33: #{tdnn_layer.2} parent=0 // pred_fallthru
    _
  // Predicated region
  $region34: #{tdnn_layer.2} parent=0 // pred_check
    _
  $region35: #{tdnn_layer.2} parent=0 // pred_check_branch
    %167 = sbr.rel (0) target = $region37
  $region36: #{tdnn_layer.2} parent=0 // pred_region
    _
  $region37: #{tdnn_layer.2} parent=0 // pred_fallthru
    _

</llo_original>
